<compile_context>
chip_gen: v6e
topology: v6e:2x2x1
jax: 0.10.0
libtpu: 0.0.40
codegen_flags: <defaults>
</compile_context>

<pallas_src>
import jax
import jax.numpy as jnp
from jax.experimental import pallas as pl
from jax.experimental.pallas import tpu as pltpu

KERNEL_SIZE = 20  # nn.Conv1d(1, 1, 20)


def _round_up(n, m):
    return ((n + m - 1) // m) * m


def _conv_band(taps, S, L):
    """Banded Toeplitz matrix (S, L) so that (x @ band)[:, l] = valid conv at l."""
    K = taps.shape[0]
    k_idx = jnp.arange(S)[:, None] - jnp.arange(L)[None, :]          # (S, L)
    valid = (k_idx >= 0) & (k_idx < K)
    gathered = taps[jnp.clip(k_idx, 0, K - 1)]
    return jnp.where(valid, gathered, 0.0).astype(jnp.float32)


def tdnn20_kernel(x_ref, band_ref, cb_ref, w1_ref, b1_ref, w2_ref, b2_ref, o_ref):
    x = x_ref[...]                                                   # (Bt, S) f32

    # ---- Conv1d(1,1,K) "valid" as a single MXU matmul + bias + ReLU ----
    # (Optionally x/band could be cast to bf16 on v6e/v7x; kept f32 for exactness.)
    h = jnp.dot(x, band_ref[...], preferred_element_type=jnp.float32)   # (Bt, L)
    h = jnp.maximum(h + cb_ref[0, 0], 0.0)

    # ---- fc_1: (Bt, L) @ (L, 2) + bias, ReLU ----
    h1 = jnp.dot(h, w1_ref[...], preferred_element_type=jnp.float32) + b1_ref[...]
    h1 = jnp.maximum(h1, 0.0)                                        # (Bt, 2)

    # ---- classifier: (Bt, 2) @ (2, 1) + bias, Sigmoid ----
    h2 = jnp.dot(h1, w2_ref[...], preferred_element_type=jnp.float32) + b2_ref[0, 0]
    o_ref[...] = jax.nn.sigmoid(h2)                                  # (Bt, 1)


def tdnn20_forward(x_ncw, params, *, block_batch=128):
    """x_ncw: (B, 1, S) float32 -> (B,) float32 (matches the torch forward)."""
    B, C, S = x_ncw.shape
    assert C == 1
    cw, cb, w1, b1, w2, b2 = params
    K = cw.shape[-1]
    L = S - K + 1
    assert L >= 1 and w1.shape == (L, 2)

    x = x_ncw.reshape(B, S).astype(jnp.float32)

    # Batch tile: multiple of 8 sublanes, capped at block_batch (default 128 -> fills MXU M).
    Bt = _round_up(min(block_batch, _round_up(B, 8)), 8)
    B_pad = _round_up(B, Bt)
    if B_pad != B:
        x = jnp.pad(x, ((0, B_pad - B), (0, 0)))
    num_tiles = B_pad // Bt

    band = _conv_band(cw.reshape(K), S, L)                           # (S, L)

    # VMEM budget sanity check (x double-buffered + resident band/weights).
    # TODO(synk): for very long sequences the O(S*L) band should be tiled along L
    # (per-tile bands of shape (Lt + K - 1, Lt)) instead of held resident.
    vmem_limit = 32 * 1024 * 1024
    vmem_needed = 4 * (2 * Bt * S + S * L + L * 2 + 2 + 2 + 2 + 2 * Bt)
    assert vmem_needed < vmem_limit, "sequence too long for resident conv band"

    cost = pl.CostEstimate(
        flops=2 * B_pad * (S * L + L * 2 + 2 * 1),
        transcendentals=B_pad,
        bytes_accessed=4 * (B_pad * S + S * L + L * 2 + B_pad),
    )

    smem_spec = pl.BlockSpec(memory_space=pltpu.MemorySpace.SMEM)

    out = pl.pallas_call(
        tdnn20_kernel,
        out_shape=jax.ShapeDtypeStruct((B_pad, 1), jnp.float32),
        grid=(num_tiles,),
        in_specs=[
            pl.BlockSpec((Bt, S), lambda i: (i, 0)),   # x: streamed per batch tile
            pl.BlockSpec((S, L), lambda i: (0, 0)),    # conv band: resident
            smem_spec,                                 # conv bias (scalar)
            pl.BlockSpec((L, 2), lambda i: (0, 0)),    # fc_1 weight: resident
            pl.BlockSpec((1, 2), lambda i: (0, 0)),    # fc_1 bias
            pl.BlockSpec((2, 1), lambda i: (0, 0)),    # classifier weight
            smem_spec,                                 # classifier bias (scalar)
        ],
        out_specs=pl.BlockSpec((Bt, 1), lambda i: (i, 0)),
        compiler_params=pltpu.CompilerParams(
            dimension_semantics=("parallel",),
            vmem_limit_bytes=vmem_limit,
        ),
        cost_estimate=cost,
    )(x, band, cb, w1, b1, w2, b2)

    return out[:B, 0]                                  # torch.flatten -> (B,)


def init_params(key, sequence_len):
    """Deterministic synthetic parameters with the module's shapes."""
    K = KERNEL_SIZE
    L = sequence_len - K + 1
    k1, k2, k3, k4, k5, k6 = jax.random.split(key, 6)
    cw = jax.random.uniform(k1, (1, K), jnp.float32, -0.2, 0.2)   # conv weight (flattened)
    cb = jax.random.uniform(k2, (1, 1), jnp.float32, -0.2, 0.2)   # conv bias
    w1 = jax.random.uniform(k3, (L, 2), jnp.float32, -0.2, 0.2)   # fc_1 weight, pre-transposed
    b1 = jax.random.uniform(k4, (1, 2), jnp.float32, -0.2, 0.2)   # fc_1 bias
    w2 = jax.random.uniform(k5, (2, 1), jnp.float32, -0.2, 0.2)   # classifier weight, pre-transposed
    b2 = jax.random.uniform(k6, (1, 1), jnp.float32, -0.2, 0.2)   # classifier bias
    return cw, cb, w1, b1, w2, b2


def reference_forward(x_ncw, params):
    """Pure-JAX reference mirroring the PyTorch forward, for sanity checking."""
    cw, cb, w1, b1, w2, b2 = params
    B, _, S = x_ncw.shape
    K = cw.shape[1]
    L = S - K + 1
    x = x_ncw.reshape(B, S)
    conv = jnp.stack([x[:, k:k + L] for k in range(K)], axis=-1) @ cw[0] + cb[0, 0]
    h = jnp.maximum(conv, 0.0)
    h1 = jnp.maximum(h @ w1 + b1, 0.0)
    h2 = h1 @ w2 + b2
    return jax.nn.sigmoid(h2).reshape(B)


if __name__ == "__main__":
    sequence_len = 32          # small but > kernel_size=20  =>  L = 13
    batch = 2

    key = jax.random.PRNGKey(0)
    kx, kp = jax.random.split(key)
    x = jax.random.normal(kx, (batch, 1, sequence_len), dtype=jnp.float32)
    params = init_params(kp, sequence_len)

    out = tdnn20_forward(x, params)
    out = jax.block_until_ready(out)

    ref = reference_forward(x, params)
    assert out.shape == (batch,)
    assert jnp.allclose(out, ref, atol=2e-5, rtol=2e-5)

    print("KERNEL_OK")
</pallas_src>

<mosaic_0001>
module attributes {stable_mosaic.version = 11 : i64} {
  func.func @tdnn20_kernel(%arg0: i32, %arg1: memref<8x32xf32, #tpu.memory_space<vmem>>, %arg2: memref<32x13xf32, #tpu.memory_space<vmem>>, %arg3: memref<1x1xf32, #tpu.memory_space<smem>>, %arg4: memref<13x2xf32, #tpu.memory_space<vmem>>, %arg5: memref<1x2xf32, #tpu.memory_space<vmem>>, %arg6: memref<2x1xf32, #tpu.memory_space<vmem>>, %arg7: memref<1x1xf32, #tpu.memory_space<smem>>, %arg8: memref<8x1xf32, #tpu.memory_space<vmem>>) attributes {dimension_semantics = [#tpu.dimension_semantics<parallel>], iteration_bounds = array<i64: 1>, scalar_prefetch = 0 : i64, scratch_operands = 0 : i64, tpu.core_type = #tpu.core_type<tc>, window_params = [{transform_indices = @transform_0, window_bounds = array<i64: 8, 32>}, {pipeline_mode = #tpu.pipeline_mode<synchronous>, transform_indices = @transform_1, window_bounds = array<i64: 32, 13>}, {transform_indices = @transform_2, window_bounds = array<i64: 1, 1>}, {pipeline_mode = #tpu.pipeline_mode<synchronous>, transform_indices = @transform_3, window_bounds = array<i64: 13, 2>}, {pipeline_mode = #tpu.pipeline_mode<synchronous>, transform_indices = @transform_4, window_bounds = array<i64: 1, 2>}, {pipeline_mode = #tpu.pipeline_mode<synchronous>, transform_indices = @transform_5, window_bounds = array<i64: 2, 1>}, {transform_indices = @transform_6, window_bounds = array<i64: 1, 1>}, {transform_indices = @transform_7, window_bounds = array<i64: 8, 1>}]} {
    %c0 = arith.constant 0 : index
    %c0_0 = arith.constant 0 : index
    %0 = vector.load %arg1[%c0, %c0_0] : memref<8x32xf32, #tpu.memory_space<vmem>>, vector<8x32xf32>
    %c0_1 = arith.constant 0 : index
    %c0_2 = arith.constant 0 : index
    %1 = vector.load %arg2[%c0_1, %c0_2] : memref<32x13xf32, #tpu.memory_space<vmem>>, vector<32x13xf32>
    %cst = arith.constant dense<0.000000e+00> : vector<8x13xf32>
    %2 = tpu.matmul %0, %1, %cst {dimension_numbers = #tpu.dot_dimension_numbers<[1], [0], [0], [1], [0, 0, 1, 1], [], []>} : vector<8x32xf32>, vector<32x13xf32>, vector<8x13xf32> -> vector<8x13xf32>
    %c0_3 = arith.constant 0 : index
    %c0_4 = arith.constant 0 : index
    %3 = memref.load %arg3[%c0_3, %c0_4] : memref<1x1xf32, #tpu.memory_space<smem>>
    %4 = vector.broadcast %3 : f32 to vector<8x13xf32>
    %5 = arith.addf %2, %4 : vector<8x13xf32>
    %cst_5 = arith.constant 0.000000e+00 : f32
    %6 = vector.broadcast %cst_5 : f32 to vector<8x13xf32>
    %7 = arith.maximumf %5, %6 : vector<8x13xf32>
    %c0_6 = arith.constant 0 : index
    %c0_7 = arith.constant 0 : index
    %8 = vector.load %arg4[%c0_6, %c0_7] : memref<13x2xf32, #tpu.memory_space<vmem>>, vector<13x2xf32>
    %cst_8 = arith.constant dense<0.000000e+00> : vector<8x2xf32>
    %9 = tpu.matmul %7, %8, %cst_8 {dimension_numbers = #tpu.dot_dimension_numbers<[1], [0], [0], [1], [0, 0, 1, 1], [], []>} : vector<8x13xf32>, vector<13x2xf32>, vector<8x2xf32> -> vector<8x2xf32>
    %c0_9 = arith.constant 0 : index
    %c0_10 = arith.constant 0 : index
    %10 = vector.load %arg5[%c0_9, %c0_10] : memref<1x2xf32, #tpu.memory_space<vmem>>, vector<1x2xf32>
    %11 = vector.broadcast %10 : vector<1x2xf32> to vector<8x2xf32>
    %12 = arith.addf %9, %11 : vector<8x2xf32>
    %cst_11 = arith.constant 0.000000e+00 : f32
    %13 = vector.broadcast %cst_11 : f32 to vector<8x2xf32>
    %14 = arith.maximumf %12, %13 : vector<8x2xf32>
    %c0_12 = arith.constant 0 : index
    %c0_13 = arith.constant 0 : index
    %15 = vector.load %arg6[%c0_12, %c0_13] : memref<2x1xf32, #tpu.memory_space<vmem>>, vector<2x1xf32>
    %cst_14 = arith.constant dense<0.000000e+00> : vector<8x1xf32>
    %16 = tpu.matmul %14, %15, %cst_14 {dimension_numbers = #tpu.dot_dimension_numbers<[1], [0], [0], [1], [0, 0, 1, 1], [], []>} : vector<8x2xf32>, vector<2x1xf32>, vector<8x1xf32> -> vector<8x1xf32>
    %c0_15 = arith.constant 0 : index
    %c0_16 = arith.constant 0 : index
    %17 = memref.load %arg7[%c0_15, %c0_16] : memref<1x1xf32, #tpu.memory_space<smem>>
    %18 = vector.broadcast %17 : f32 to vector<8x1xf32>
    %19 = arith.addf %16, %18 : vector<8x1xf32>
    %20 = arith.negf %19 : vector<8x1xf32>
    %21 = math.exp %20 : vector<8x1xf32>
    %cst_17 = arith.constant 1.000000e+00 : f32
    %22 = vector.broadcast %cst_17 : f32 to vector<8x1xf32>
    %23 = arith.addf %22, %21 : vector<8x1xf32>
    %24 = arith.divf %22, %23 : vector<8x1xf32>
    %c0_18 = arith.constant 0 : index
    %c0_19 = arith.constant 0 : index
    %25 = vector.load %arg8[%c0_18, %c0_19] : memref<8x1xf32, #tpu.memory_space<vmem>>, vector<8x1xf32>
    tpu.vector_store %arg8[%c0_18, %c0_19], %24 {strides = array<i32>} : memref<8x1xf32, #tpu.memory_space<vmem>>, vector<8x1xf32>,
    return
  }
  func.func @transform_0(%arg0: i32) -> (i32, i32) {
    %c0_i32 = arith.constant 0 : i32
    %c0_i32_0 = arith.constant 0 : i32
    return %arg0, %c0_i32 : i32, i32
  }
  func.func @transform_1(%arg0: i32) -> (i32, i32) {
    %c0_i32 = arith.constant 0 : i32
    %c0_i32_0 = arith.constant 0 : i32
    %c0_i32_1 = arith.constant 0 : i32
    return %c0_i32, %c0_i32_0 : i32, i32
  }
  func.func @transform_2(%arg0: i32) -> (i32, i32) {
    %c0_i32 = arith.constant 0 : i32
    %c0_i32_0 = arith.constant 0 : i32
    %c0_i32_1 = arith.constant 0 : i32
    return %c0_i32, %c0_i32_0 : i32, i32
  }
  func.func @transform_3(%arg0: i32) -> (i32, i32) {
    %c0_i32 = arith.constant 0 : i32
    %c0_i32_0 = arith.constant 0 : i32
    %c0_i32_1 = arith.constant 0 : i32
    return %c0_i32, %c0_i32_0 : i32, i32
  }
  func.func @transform_4(%arg0: i32) -> (i32, i32) {
    %c0_i32 = arith.constant 0 : i32
    %c0_i32_0 = arith.constant 0 : i32
    %c0_i32_1 = arith.constant 0 : i32
    return %c0_i32, %c0_i32_0 : i32, i32
  }
  func.func @transform_5(%arg0: i32) -> (i32, i32) {
    %c0_i32 = arith.constant 0 : i32
    %c0_i32_0 = arith.constant 0 : i32
    %c0_i32_1 = arith.constant 0 : i32
    return %c0_i32, %c0_i32_0 : i32, i32
  }
  func.func @transform_6(%arg0: i32) -> (i32, i32) {
    %c0_i32 = arith.constant 0 : i32
    %c0_i32_0 = arith.constant 0 : i32
    %c0_i32_1 = arith.constant 0 : i32
    return %c0_i32, %c0_i32_0 : i32, i32
  }
  func.func @transform_7(%arg0: i32) -> (i32, i32) {
    %c0_i32 = arith.constant 0 : i32
    %c0_i32_0 = arith.constant 0 : i32
    return %arg0, %c0_i32 : i32, i32
  }
}

</mosaic_0001>

<llo_original>
// kernel: tpu_custom_call.1
$region0: #{tpu_custom_call.1}
  #allocation0 [shape = 'u32[]', space=smem, size = 0x4, offset = 0x4, fixed_abs, tag = 'smem constant byte address 0x4 - core index']
  #allocation1 [shape = 'u32[144,128]{1,0:T(1,128)}', space=vmem, size = 0x12000, scoped, tag = 'internal scratch']
  #allocation2 [shape = 'f32[1,1]{1,0:T(1,128)S(6)}', space=smem, size = 0x200, scoped, tag = 'scoped memory for tpu_custom_call.1']
  #allocation3 [shape = 'f32[1,1]{1,0:T(1,128)S(6)}', space=smem, size = 0x200, scoped, tag = 'scoped memory for tpu_custom_call.1']
  %s0 = inlined_call_operand.vmem [shape: f32[8,32], index: 0, kind: input, shape index: {}]
  %s1 = inlined_call_operand.vmem [shape: f32[32,13], index: 1, kind: input, shape index: {}]
  %s2 = inlined_call_operand.<no memory space> [shape: f32[1,1], index: 2, kind: input, shape index: {}]
  %s3 = inlined_call_operand.vmem [shape: f32[13,2], index: 3, kind: input, shape index: {}]
  %s4 = inlined_call_operand.vmem [shape: f32[1,2], index: 4, kind: input, shape index: {}]
  %s5 = inlined_call_operand.vmem [shape: f32[2,1], index: 5, kind: input, shape index: {}]
  %s6 = inlined_call_operand.<no memory space> [shape: f32[1,1], index: 6, kind: input, shape index: {}]
  %s7 = inlined_call_operand.vmem [shape: f32[8,1], index: 7, kind: output, shape index: {}]
  %s8 = sld [smem:[#allocation0]]
  $region38: #{tpu_custom_call.1} parent=0
    _
  %s10 = ssub.s32 1, %s8
  %s11 = scalar_select 0, %s10, %s8
  %12 = sst [smem:[#allocation2]] %s2
  %13 = sst [smem:[#allocation3]] %s6
  // Predicated region
  $region2: #{tpu_custom_call.1} parent=0 // pred_check
    _
  $region3: #{tpu_custom_call.1} parent=0 // pred_check_branch
    %15 = sbr.rel (0) target = $region5
  $region4: #{tpu_custom_call.1} parent=0 // pred_region
    _
  $region5: #{tpu_custom_call.1} parent=0 // pred_fallthru
    _
  // Predicated region
  $region6: #{tpu_custom_call.1} parent=0 // pred_check
    _
  $region7: #{tpu_custom_call.1} parent=0 // pred_check_branch
    %17 = sbr.rel (0) target = $region9
  $region8: #{tpu_custom_call.1} parent=0 // pred_region
    _
  $region9: #{tpu_custom_call.1} parent=0 // pred_fallthru
    _
  // Predicated region
  $region10: #{tpu_custom_call.1} parent=0 // pred_check
    _
  $region11: #{tpu_custom_call.1} parent=0 // pred_check_branch
    %19 = sbr.rel (0) target = $region13
  $region12: #{tpu_custom_call.1} parent=0 // pred_region
    _
  $region13: #{tpu_custom_call.1} parent=0 // pred_fallthru
    _
  // Predicated region
  $region14: #{tpu_custom_call.1} parent=0 // pred_check
    _
  $region15: #{tpu_custom_call.1} parent=0 // pred_check_branch
    %21 = sbr.rel (0) target = $region17
  $region16: #{tpu_custom_call.1} parent=0 // pred_region
    _
  $region17: #{tpu_custom_call.1} parent=0 // pred_fallthru
    _
  // Predicated region
  $region18: #{tpu_custom_call.1} parent=0 // pred_check
    _
  $region19: #{tpu_custom_call.1} parent=0 // pred_check_branch
    %23 = sbr.rel (0) target = $region21
  $region20: #{tpu_custom_call.1} parent=0 // pred_region
    _
  $region21: #{tpu_custom_call.1} parent=0 // pred_fallthru
    _
  // Predicated region
  $region22: #{tpu_custom_call.1} parent=0 // pred_check
    _
  $region23: #{tpu_custom_call.1} parent=0 // pred_check_branch
    %25 = sbr.rel (0) target = $region25
  $region24: #{tpu_custom_call.1} parent=0 // pred_region
    _
  $region25: #{tpu_custom_call.1} parent=0 // pred_fallthru
    _
  // Predicated region
  $region26: #{tpu_custom_call.1} parent=0 // pred_check
    _
  $region27: #{tpu_custom_call.1} parent=0 // pred_check_branch
    %27 = sbr.rel (0) target = $region29
  $region28: #{tpu_custom_call.1} parent=0 // pred_region
    _
  $region29: #{tpu_custom_call.1} parent=0 // pred_fallthru
    _
  %v28 = vld [vmem:[%s0] sm:$0xff]
  %v29 = vld [vmem:[%s1] sm:$0xff]
  %v30 = vld [vmem:[%s1 + $0x8] sm:$0xff]
  %v31 = vld [vmem:[%s1 + $0x10] sm:$0xff]
  %v32 = vld [vmem:[%s1 + $0x18] sm:$0xff]
  %s33 = sld [smem:[#allocation2]]
  %v34 = vstv %s33
  %vm35 = vcmask 261120
  %v37 = vsel %vm35, %v28, 0
  %39 = vmatprep.subr.mxu0 0.0
  %40 = vmatpush1.msra.mxu0 0.0
  %41 = vmatprep.subr.mxu0 0.0
  %42 = vmatpush1.msra.mxu0 0.0
  %43 = vmatprep.subr.mxu0 0.0
  %44 = vmatpush1.msra.mxu0 0.0
  %45 = vmatprep.subr.mxu0 0.0
  %46 = vmatpush1.msra.mxu0 0.0
  %47 = vmatprep.subr.mxu0 0.0
  %48 = vmatpush1.msra.mxu0 0.0
  %49 = vmatprep.subr.mxu0 0.0
  %50 = vmatpush1.msra.mxu0 0.0
  %51 = vmatprep.subr.mxu0 0.0
  %52 = vmatpush1.msra.mxu0 0.0
  %53 = vmatprep.subr.mxu0 0.0
  %54 = vmatpush1.msra.mxu0 0.0
  %55 = vmatprep.subr.mxu0 0.0
  %56 = vmatpush1.msra.mxu0 0.0
  %57 = vmatprep.subr.mxu0 0.0
  %58 = vmatpush1.msra.mxu0 0.0
  %59 = vmatprep.subr.mxu0 0.0
  %60 = vmatpush1.msra.mxu0 0.0
  %61 = vmatprep.subr.mxu0 0.0
  %62 = vmatpush1.msra.mxu0 0.0
  %63 = vmatprep.subr.mxu0 0.0
  %64 = vmatpush1.msra.mxu0 %v32
  %65 = vmatprep.subr.mxu0 0.0
  %66 = vmatpush1.msra.mxu0 %v31
  %67 = vmatprep.subr.mxu0 0.0
  %68 = vmatpush1.msra.mxu0 %v30
  %69 = vmatprep.subr.mxu0 0.0
  %70 = vmatpush1.msra.mxu0 %v29
  %71 = vmatprep.subr.mxu0 0.0
  %72 = vmatpush2.msra.mxu0 0.0
  %73 = vmatprep.subr.mxu0 0.0
  %74 = vmatpush2.msra.mxu0 0.0
  %75 = vmatprep.subr.mxu0 0.0
  %76 = vmatpush2.msra.mxu0 0.0
  %77 = vmatprep.subr.mxu0 0.0
  %78 = vmatpush2.msra.mxu0 0.0
  %79 = vmatprep.subr.mxu0 0.0
  %80 = vmatpush2.msra.mxu0 0.0
  %81 = vmatprep.subr.mxu0 0.0
  %82 = vmatpush2.msra.mxu0 0.0
  %83 = vmatprep.subr.mxu0 0.0
  %84 = vmatpush2.msra.mxu0 0.0
  %85 = vmatprep.subr.mxu0 0.0
  %86 = vmatpush2.msra.mxu0 0.0
  %87 = vmatprep.subr.mxu0 0.0
  %88 = vmatpush2.msra.mxu0 0.0
  %89 = vmatprep.subr.mxu0 0.0
  %90 = vmatpush2.msra.mxu0 0.0
  %91 = vmatprep.subr.mxu0 0.0
  %92 = vmatpush2.msra.mxu0 0.0
  %93 = vmatprep.subr.mxu0 0.0
  %94 = vmatpush2.msra.mxu0 0.0
  %95 = vmatprep.subr.mxu0 0.0
  %96 = vmatpush2.msra.mxu0 0.0
  %97 = vmatprep.subr.mxu0 0.0
  %98 = vmatpush2.msra.mxu0 0.0
  %99 = vmatprep.subr.mxu0 0.0
  %100 = vmatpush2.msra.mxu0 0.0
  %101 = vmatprep.subr.mxu0 0.0
  %102 = vmatpush2.msra.mxu0 0.0
  %103 = vmatprep.mubr.f32.mxu0 0.0
  %104 = vmatmul.mubr.f32.gmra.mxu0 %v37
  %v105 = vpop.f32.mrf.mxu0
  %v106 = vadd.f32 %v34, %v105
  %v107 = vpop.f32.mrf.mxu0
  %108 = vdwg.mxu0
  %v109 = vmax.f32 %v106, 0.0
  %v110 = vld [vmem:[%s3] sm:$0xff]
  %v111 = vld [vmem:[%s3 + $0x8] sm:$0x1f]
  %v112 = vld [vmem:[%s4] sm:$0x1]
  %v114 = vlaneseq
  %v115 = vshrl.u32 %v114, 7
  %v116 = vsub.s32 0, %v115
  %v117 = vrot.slane %v112, %v116
  %vm119 = vcmask 105472
  %v121 = vsel %vm119, %v109, 0
  %vm123 = vcmask 1044480
  %v125 = vsel %vm123, %v111, 0
  %127 = vmatprep.subr.mxu0 0.0
  %128 = vmatpush1.msra.mxu0 0.0
  %129 = vmatprep.subr.mxu0 0.0
  %130 = vmatpush1.msra.mxu0 0.0
  %131 = vmatprep.subr.mxu0 0.0
  %132 = vmatpush1.msra.mxu0 0.0
  %133 = vmatprep.subr.mxu0 0.0
  %134 = vmatpush1.msra.mxu0 0.0
  %135 = vmatprep.subr.mxu0 0.0
  %136 = vmatpush1.msra.mxu0 0.0
  %137 = vmatprep.subr.mxu0 0.0
  %138 = vmatpush1.msra.mxu0 0.0
  %139 = vmatprep.subr.mxu0 0.0
  %140 = vmatpush1.msra.mxu0 0.0
  %141 = vmatprep.subr.mxu0 0.0
  %142 = vmatpush1.msra.mxu0 0.0
  %143 = vmatprep.subr.mxu0 0.0
  %144 = vmatpush1.msra.mxu0 0.0
  %145 = vmatprep.subr.mxu0 0.0
  %146 = vmatpush1.msra.mxu0 0.0
  %147 = vmatprep.subr.mxu0 0.0
  %148 = vmatpush1.msra.mxu0 0.0
  %149 = vmatprep.subr.mxu0 0.0
  %150 = vmatpush1.msra.mxu0 0.0
  %151 = vmatprep.subr.mxu0 0.0
  %152 = vmatpush1.msra.mxu0 0.0
  %153 = vmatprep.subr.mxu0 0.0
  %154 = vmatpush1.msra.mxu0 0.0
  %155 = vmatprep.subr.mxu0 0.0
  %156 = vmatpush1.msra.mxu0 %v125
  %157 = vmatprep.subr.mxu0 0.0
  %158 = vmatpush1.msra.mxu0 %v110
  %159 = vmatprep.subr.mxu0 0.0
  %160 = vmatpush2.msra.mxu0 0.0
  %161 = vmatprep.subr.mxu0 0.0
  %162 = vmatpush2.msra.mxu0 0.0
  %163 = vmatprep.subr.mxu0 0.0
  %164 = vmatpush2.msra.mxu0 0.0
  %165 = vmatprep.subr.mxu0 0.0
  %166 = vmatpush2.msra.mxu0 0.0
  %167 = vmatprep.subr.mxu0 0.0
  %168 = vmatpush2.msra.mxu0 0.0
  %169 = vmatprep.subr.mxu0 0.0
  %170 = vmatpush2.msra.mxu0 0.0
  %171 = vmatprep.subr.mxu0 0.0
  %172 = vmatpush2.msra.mxu0 0.0
  %173 = vmatprep.subr.mxu0 0.0
  %174 = vmatpush2.msra.mxu0 0.0
  %175 = vmatprep.subr.mxu0 0.0
  %176 = vmatpush2.msra.mxu0 0.0
  %177 = vmatprep.subr.mxu0 0.0
  %178 = vmatpush2.msra.mxu0 0.0
  %179 = vmatprep.subr.mxu0 0.0
  %180 = vmatpush2.msra.mxu0 0.0
  %181 = vmatprep.subr.mxu0 0.0
  %182 = vmatpush2.msra.mxu0 0.0
  %183 = vmatprep.subr.mxu0 0.0
  %184 = vmatpush2.msra.mxu0 0.0
  %185 = vmatprep.subr.mxu0 0.0
  %186 = vmatpush2.msra.mxu0 0.0
  %187 = vmatprep.subr.mxu0 0.0
  %188 = vmatpush2.msra.mxu0 0.0
  %189 = vmatprep.subr.mxu0 0.0
  %190 = vmatpush2.msra.mxu0 0.0
  %191 = vmatprep.mubr.f32.mxu0 0.0
  %192 = vmatmul.mubr.f32.gmra.mxu0 %v121
  %v193 = vpop.f32.mrf.mxu0
  %v194 = vadd.f32 %v117, %v193
  %v195 = vpop.f32.mrf.mxu0
  %196 = vdwg.mxu0
  %v197 = vmax.f32 %v194, 0.0
  %v198 = vld [vmem:[%s5] sm:$0x3]
  %s199 = sld [smem:[#allocation3]]
  %v200 = vstv %s199
  %vm201 = vcmask 15360
  %v203 = vsel %vm201, %v197, 0
  %vm205 = vcmask 1041408
  %v207 = vsel %vm205, %v198, 0
  %209 = vmatprep.subr.mxu0 0.0
  %210 = vmatpush1.msra.mxu0 0.0
  %211 = vmatprep.subr.mxu0 0.0
  %212 = vmatpush1.msra.mxu0 0.0
  %213 = vmatprep.subr.mxu0 0.0
  %214 = vmatpush1.msra.mxu0 0.0
  %215 = vmatprep.subr.mxu0 0.0
  %216 = vmatpush1.msra.mxu0 0.0
  %217 = vmatprep.subr.mxu0 0.0
  %218 = vmatpush1.msra.mxu0 0.0
  %219 = vmatprep.subr.mxu0 0.0
  %220 = vmatpush1.msra.mxu0 0.0
  %221 = vmatprep.subr.mxu0 0.0
  %222 = vmatpush1.msra.mxu0 0.0
  %223 = vmatprep.subr.mxu0 0.0
  %224 = vmatpush1.msra.mxu0 0.0
  %225 = vmatprep.subr.mxu0 0.0
  %226 = vmatpush1.msra.mxu0 0.0
  %227 = vmatprep.subr.mxu0 0.0
  %228 = vmatpush1.msra.mxu0 0.0
  %229 = vmatprep.subr.mxu0 0.0
  %230 = vmatpush1.msra.mxu0 0.0
  %231 = vmatprep.subr.mxu0 0.0
  %232 = vmatpush1.msra.mxu0 0.0
  %233 = vmatprep.subr.mxu0 0.0
  %234 = vmatpush1.msra.mxu0 0.0
  %235 = vmatprep.subr.mxu0 0.0
  %236 = vmatpush1.msra.mxu0 0.0
  %237 = vmatprep.subr.mxu0 0.0
  %238 = vmatpush1.msra.mxu0 0.0
  %239 = vmatprep.subr.mxu0 0.0
  %240 = vmatpush1.msra.mxu0 %v207
  %241 = vmatprep.subr.mxu0 0.0
  %242 = vmatpush2.msra.mxu0 0.0
  %243 = vmatprep.subr.mxu0 0.0
  %244 = vmatpush2.msra.mxu0 0.0
  %245 = vmatprep.subr.mxu0 0.0
  %246 = vmatpush2.msra.mxu0 0.0
  %247 = vmatprep.subr.mxu0 0.0
  %248 = vmatpush2.msra.mxu0 0.0
  %249 = vmatprep.subr.mxu0 0.0
  %250 = vmatpush2.msra.mxu0 0.0
  %251 = vmatprep.subr.mxu0 0.0
  %252 = vmatpush2.msra.mxu0 0.0
  %253 = vmatprep.subr.mxu0 0.0
  %254 = vmatpush2.msra.mxu0 0.0
  %255 = vmatprep.subr.mxu0 0.0
  %256 = vmatpush2.msra.mxu0 0.0
  %257 = vmatprep.subr.mxu0 0.0
  %258 = vmatpush2.msra.mxu0 0.0
  %259 = vmatprep.subr.mxu0 0.0
  %260 = vmatpush2.msra.mxu0 0.0
  %261 = vmatprep.subr.mxu0 0.0
  %262 = vmatpush2.msra.mxu0 0.0
  %263 = vmatprep.subr.mxu0 0.0
  %264 = vmatpush2.msra.mxu0 0.0
  %265 = vmatprep.subr.mxu0 0.0
  %266 = vmatpush2.msra.mxu0 0.0
  %267 = vmatprep.subr.mxu0 0.0
  %268 = vmatpush2.msra.mxu0 0.0
  %269 = vmatprep.subr.mxu0 0.0
  %270 = vmatpush2.msra.mxu0 0.0
  %271 = vmatprep.subr.mxu0 0.0
  %272 = vmatpush2.msra.mxu0 0.0
  %273 = vmatprep.mubr.f32.mxu0 0.0
  %274 = vmatmul.mubr.f32.gmra.mxu0 %v203
  %v275 = vpop.f32.mrf.mxu0
  %v276 = vadd.f32 %v200, %v275
  %v277 = vpop.f32.mrf.mxu0
  %278 = vdwg.mxu0
  %v279 = vxor.u32 %v276, 2147483648
  %v280 = vmul.f32 %v279, 1.442695
  %v281 = vpow.pop %v280
  %v282 = vadd.f32 %v281, 1.0
  %v283 = vrcp.pop %v282
  %v284 = vmul.f32 1.0, %v283
  %vm285 = vcmask 7168
  %286 = vst.msk [vmem:[%s7] sm:$0xff] %vm285, %v284
  // Predicated region
  $region30: #{tpu_custom_call.1} parent=0 // pred_check
    _
  $region31: #{tpu_custom_call.1} parent=0 // pred_check_branch
    %288 = sbr.rel (0) target = $region33
  $region32: #{tpu_custom_call.1} parent=0 // pred_region
    _
  $region33: #{tpu_custom_call.1} parent=0 // pred_fallthru
    _
  // Predicated region
  $region34: #{tpu_custom_call.1} parent=0 // pred_check
    _
  $region35: #{tpu_custom_call.1} parent=0 // pred_check_branch
    %290 = sbr.rel (0) target = $region37
  $region36: #{tpu_custom_call.1} parent=0 // pred_region
    _
  $region37: #{tpu_custom_call.1} parent=0 // pred_fallthru
    _

</llo_original>
